<compile_context>
chip_gen: v7x
topology: tpu7x:2x2x1
jax: 0.10.0
libtpu: 0.0.40
codegen_flags: <defaults>
</compile_context>

<pallas_src>
import numpy as np
import jax
import jax.numpy as jnp
from jax.experimental import pallas as pl
from jax.experimental.pallas import tpu as pltpu

_EPS = float(np.finfo(np.float64).eps)       # torch.finfo(float).eps (float64 eps)
_NUM_CORE_SPLITS = 2                         # v7x megacore split; harmless serial split on 1-TC chips
_BLOCK_BYTES_BUDGET = 2 * 1024 * 1024        # target bytes per (double-buffered) input block
_VMEM_LIMIT_BYTES = 32 * 1024 * 1024         # fits v5e/v6e (128 MiB phys) and v7x (64 MiB phys)


def _round_up(x, m):
    return ((x + m - 1) // m) * m


def _make_kernel(red_axis):
    """Kernel over 2-D tiles; `red_axis` is the softmax/reduction axis of the tile."""

    def kernel(z_ref, lab_ref, out_ref, acc_ref):
        t = pl.program_id(1)

        @pl.when(t == 0)
        def _init():
            acc_ref[...] = jnp.zeros_like(acc_ref)

        z = z_ref[...].astype(jnp.float32)
        lab = lab_ref[...].astype(jnp.float32)

        # Numerically stable softmax pieces along the group axis.
        m = jnp.max(z, axis=red_axis, keepdims=True)
        e = jnp.exp(z - m)
        s = jnp.sum(e, axis=red_axis, keepdims=True)
        # log(softmax(z) + eps) == log(e + eps*s) - log(s)  (exact identity;
        # removes the per-element divide on the EUP path).
        w = lab * (jnp.log(e + _EPS * s) - jnp.log(s))

        # Wide accumulator: pure VPU add per step; scalar reduce only at finalize.
        acc_ref[...] += jnp.sum(w, axis=red_axis, keepdims=True)

        @pl.when(t == pl.num_programs(1) - 1)
        def _finalize():
            partial = jnp.sum(acc_ref[...])
            out_ref[...] = jnp.broadcast_to(partial, out_ref.shape).astype(out_ref.dtype)

    return kernel


def rank_cross_entropy_loss_pallas(y_pred, y_true, num_neg=1):
    """y_pred, y_true: [N, D] with N % (num_neg+1) == 0 -> scalar loss (f32)."""
    N, D = y_pred.shape
    group = num_neg + 1
    if N % group != 0:
        raise ValueError("rows must be divisible by num_neg + 1")
    G = N // group                 # number of (pos, negs...) groups
    K = group * D                  # logits width per group

    # Strided row slicing + dim=-1 concat == contiguous row-major regroup.
    logits = y_pred.reshape(G, K)
    labels = y_true.reshape(G, K)

    itemsize = jnp.dtype(y_pred.dtype).itemsize
    sub_mult = max(8, 32 // itemsize)          # sublane multiple (8 f32 / 16 bf16 / 32 int8)

    lane_dense = K < 128
    if lane_dense:
        # [K, G]: groups along the 128-lane axis, the K softmax entries along sublanes.
        logits = logits.T
        labels = labels.T
        bytes_per_lane = _round_up(K, sub_mult) * itemsize
        budget = max(128, (_BLOCK_BYTES_BUDGET // bytes_per_lane) // 128 * 128)
        n_tiles = pl.cdiv(G, budget)
        total_tiles = _round_up(n_tiles, _NUM_CORE_SPLITS)
        tile = _round_up(pl.cdiv(G, total_tiles), 128)
        G_pad = total_tiles * tile
        if G_pad != G:
            pad = G_pad - G       # padded labels are 0 -> contribute 0 to the sum
            logits = jnp.pad(logits, ((0, 0), (0, pad)))
            labels = jnp.pad(labels, ((0, 0), (0, pad)))
        tiles_per_core = total_tiles // _NUM_CORE_SPLITS
        block = (K, tile)
        idx = lambda c, t, tpc=tiles_per_core: (0, c * tpc + t)
        acc_shape = (1, tile)
        red_axis = 0
    else:
        # [G, K]: lane axis already dense (K >= 128).
        bytes_per_row = _round_up(K, 128) * itemsize
        budget = max(sub_mult, (_BLOCK_BYTES_BUDGET // bytes_per_row) // sub_mult * sub_mult)
        n_tiles = pl.cdiv(G, budget)
        total_tiles = _round_up(n_tiles, _NUM_CORE_SPLITS)
        tile = _round_up(pl.cdiv(G, total_tiles), sub_mult)
        G_pad = total_tiles * tile
        if G_pad != G:
            pad = G_pad - G
            logits = jnp.pad(logits, ((0, pad), (0, 0)))
            labels = jnp.pad(labels, ((0, pad), (0, 0)))
        tiles_per_core = total_tiles // _NUM_CORE_SPLITS
        block = (tile, K)
        idx = lambda c, t, tpc=tiles_per_core: (c * tpc + t, 0)
        acc_shape = (tile, 1)
        red_axis = 1

    kernel = _make_kernel(red_axis)

    # One lane-dense (8,128) partial-sum block per core split; combine outside.
    partials = pl.pallas_call(
        kernel,
        out_shape=jax.ShapeDtypeStruct((_NUM_CORE_SPLITS, 8, 128), jnp.float32),
        grid_spec=pltpu.PrefetchScalarGridSpec(
            num_scalar_prefetch=0,
            grid=(_NUM_CORE_SPLITS, tiles_per_core),
            in_specs=[
                pl.BlockSpec(block, idx),
                pl.BlockSpec(block, idx),
            ],
            out_specs=pl.BlockSpec((1, 8, 128), lambda c, t: (c, 0, 0)),
            scratch_shapes=[pltpu.VMEM(acc_shape, jnp.float32)],
        ),
        compiler_params=pltpu.CompilerParams(
            dimension_semantics=("parallel", "arbitrary"),
            vmem_limit_bytes=_VMEM_LIMIT_BYTES,
        ),
    )(logits, labels)

    total = jnp.sum(partials[:, 0, 0])
    return -(total / jnp.float32(G))


def rank_cross_entropy_loss_ref(y_pred, y_true, num_neg=1):
    """Pure-JAX mirror of the PyTorch forward (correctness check)."""
    group = num_neg + 1
    logits = y_pred[::group, :]
    labels = y_true[::group, :]
    for k in range(num_neg):
        logits = jnp.concatenate([logits, y_pred[k + 1::group, :]], axis=-1)
        labels = jnp.concatenate([labels, y_true[k + 1::group, :]], axis=-1)
    probs = jax.nn.softmax(logits, axis=-1)
    return -jnp.mean(jnp.sum(labels * jnp.log(probs + _EPS), axis=-1))


if __name__ == "__main__":
    key = jax.random.PRNGKey(0)

    # (num_neg, N, D, dtype): exercises the lane-dense (K<128) path, the
    # row-major (K>=128) path, and padding + native bf16 streaming.
    configs = [
        (3, 64, 2, jnp.float32),    # G=16,  K=8   -> lane-dense path
        (1, 64, 64, jnp.float32),   # G=32,  K=128 -> row path, no padding
        (2, 66, 48, jnp.bfloat16),  # G=22,  K=144 -> row path, padded, bf16 inputs
    ]

    loss_fn = jax.jit(rank_cross_entropy_loss_pallas, static_argnames=("num_neg",))

    for num_neg, N, D, dtype in configs:
        key, kp, kt = jax.random.split(key, 3)
        y_pred = jax.random.normal(kp, (N, D), jnp.float32).astype(dtype)
        y_true = jax.random.uniform(kt, (N, D), jnp.float32).astype(dtype)

        loss = jax.block_until_ready(loss_fn(y_pred, y_true, num_neg=num_neg))
        ref = rank_cross_entropy_loss_ref(
            y_pred.astype(jnp.float32), y_true.astype(jnp.float32), num_neg=num_neg)
        np.testing.assert_allclose(
            np.asarray(loss), np.asarray(ref), atol=1e-5, rtol=1e-4)

    print("KERNEL_OK")
</pallas_src>

<mosaic_0001>
module attributes {stable_mosaic.version = 11 : i64} {
  func.func @kernel(%arg0: i32, %arg1: i32, %arg2: memref<8x128xf32, #tpu.memory_space<vmem>>, %arg3: memref<8x128xf32, #tpu.memory_space<vmem>>, %arg4: memref<1x8x128xf32, #tpu.memory_space<vmem>>, %arg5: memref<1x128xf32, #tpu.memory_space<vmem>>) attributes {dimension_semantics = [#tpu.dimension_semantics<parallel>, #tpu.dimension_semantics<arbitrary>], iteration_bounds = array<i64: 2, 1>, scalar_prefetch = 0 : i64, scratch_operands = 1 : i64, tpu.core_type = #tpu.core_type<tc>, window_params = [{transform_indices = @transform_0, window_bounds = array<i64: 8, 128>}, {transform_indices = @transform_1, window_bounds = array<i64: 8, 128>}, {transform_indices = @transform_2, window_bounds = array<i64: 1, 8, 128>}]} {
    %c0_i32 = arith.constant 0 : i32
    %0 = arith.cmpi eq, %arg1, %c0_i32 : i32
    %1 = arith.extui %0 : i1 to i32
    %c0_i32_0 = arith.constant 0 : i32
    %2 = arith.cmpi ne, %1, %c0_i32_0 : i32
    scf.if %2 {
      %cst_13 = arith.constant 0.000000e+00 : f32
      %29 = vector.broadcast %cst_13 : f32 to vector<1x128xf32>
      %c0_14 = arith.constant 0 : index
      %c0_15 = arith.constant 0 : index
      %30 = vector.load %arg5[%c0_14, %c0_15] : memref<1x128xf32, #tpu.memory_space<vmem>>, vector<1x128xf32>
      tpu.vector_store %arg5[%c0_14, %c0_15], %29 {strides = array<i32>} : memref<1x128xf32, #tpu.memory_space<vmem>>, vector<1x128xf32>,
    } else {
    }
    %c0 = arith.constant 0 : index
    %c0_1 = arith.constant 0 : index
    %3 = vector.load %arg2[%c0, %c0_1] : memref<8x128xf32, #tpu.memory_space<vmem>>, vector<8x128xf32>
    %c0_2 = arith.constant 0 : index
    %c0_3 = arith.constant 0 : index
    %4 = vector.load %arg3[%c0_2, %c0_3] : memref<8x128xf32, #tpu.memory_space<vmem>>, vector<8x128xf32>
    %cst = arith.constant dense<0xFF800000> : vector<128xf32>
    %5 = vector.multi_reduction <maximumf>, %3, %cst [0] : vector<8x128xf32> to vector<128xf32>
    %6 = vector.shape_cast %5 : vector<128xf32> to vector<1x128xf32>
    %7 = vector.broadcast %6 : vector<1x128xf32> to vector<8x128xf32>
    %8 = arith.subf %3, %7 : vector<8x128xf32>
    %9 = math.exp %8 : vector<8x128xf32>
    %cst_4 = arith.constant dense<0.000000e+00> : vector<128xf32>
    %10 = vector.multi_reduction <add>, %9, %cst_4 [0] : vector<8x128xf32> to vector<128xf32>
    %11 = vector.shape_cast %10 : vector<128xf32> to vector<1x128xf32>
    %cst_5 = arith.constant 2.22044605E-16 : f32
    %12 = vector.broadcast %cst_5 : f32 to vector<1x128xf32>
    %13 = arith.mulf %12, %11 : vector<1x128xf32>
    %14 = vector.broadcast %13 : vector<1x128xf32> to vector<8x128xf32>
    %15 = arith.addf %9, %14 : vector<8x128xf32>
    %16 = math.log %15 : vector<8x128xf32>
    %17 = math.log %11 : vector<1x128xf32>
    %18 = vector.broadcast %17 : vector<1x128xf32> to vector<8x128xf32>
    %19 = arith.subf %16, %18 : vector<8x128xf32>
    %20 = arith.mulf %4, %19 : vector<8x128xf32>
    %c0_6 = arith.constant 0 : index
    %c0_7 = arith.constant 0 : index
    %21 = vector.load %arg5[%c0_6, %c0_7] : memref<1x128xf32, #tpu.memory_space<vmem>>, vector<1x128xf32>
    %cst_8 = arith.constant dense<0.000000e+00> : vector<128xf32>
    %22 = vector.multi_reduction <add>, %20, %cst_8 [0] : vector<8x128xf32> to vector<128xf32>
    %23 = vector.shape_cast %22 : vector<128xf32> to vector<1x128xf32>
    %24 = arith.addf %21, %23 : vector<1x128xf32>
    %c0_9 = arith.constant 0 : index
    %c0_10 = arith.constant 0 : index
    %25 = vector.load %arg5[%c0_9, %c0_10] : memref<1x128xf32, #tpu.memory_space<vmem>>, vector<1x128xf32>
    tpu.vector_store %arg5[%c0_9, %c0_10], %24 {strides = array<i32>} : memref<1x128xf32, #tpu.memory_space<vmem>>, vector<1x128xf32>,
    %c0_i32_11 = arith.constant 0 : i32
    %26 = arith.cmpi eq, %arg1, %c0_i32_11 : i32
    %27 = arith.extui %26 : i1 to i32
    %c0_i32_12 = arith.constant 0 : i32
    %28 = arith.cmpi ne, %27, %c0_i32_12 : i32
    scf.if %28 {
      %c0_13 = arith.constant 0 : index
      %c0_14 = arith.constant 0 : index
      %29 = vector.load %arg5[%c0_13, %c0_14] : memref<1x128xf32, #tpu.memory_space<vmem>>, vector<1x128xf32>
      %30 = vector.shape_cast %29 : vector<1x128xf32> to vector<1x1x128xf32>
      %cst_15 = arith.constant dense<0.000000e+00> : vector<1xf32>
      %31 = vector.multi_reduction <add>, %30, %cst_15 [1, 2] : vector<1x1x128xf32> to vector<1xf32>
      %32 = vector.shape_cast %31 : vector<1xf32> to vector<1x1x1xf32>
      %33 = vector.extract %32[0, 0, 0] : f32 from vector<1x1x1xf32>
      %34 = vector.broadcast %33 : f32 to vector<1x8x128xf32>
      %c0_16 = arith.constant 0 : index
      %c0_17 = arith.constant 0 : index
      %c0_18 = arith.constant 0 : index
      %35 = vector.load %arg4[%c0_16, %c0_17, %c0_18] : memref<1x8x128xf32, #tpu.memory_space<vmem>>, vector<1x8x128xf32>
      tpu.vector_store %arg4[%c0_16, %c0_17, %c0_18], %34 {strides = array<i32>} : memref<1x8x128xf32, #tpu.memory_space<vmem>>, vector<1x8x128xf32>,
    } else {
    }
    return
  }
  func.func @transform_0(%arg0: i32, %arg1: i32) -> (i32, i32) {
    %c1_i32 = arith.constant 1 : i32
    %0 = arith.muli %arg0, %c1_i32 : i32
    %1 = arith.addi %0, %arg1 : i32
    %c0_i32 = arith.constant 0 : i32
    %c0_i32_0 = arith.constant 0 : i32
    return %c0_i32, %1 : i32, i32
  }
  func.func @transform_1(%arg0: i32, %arg1: i32) -> (i32, i32) {
    %c1_i32 = arith.constant 1 : i32
    %0 = arith.muli %arg0, %c1_i32 : i32
    %1 = arith.addi %0, %arg1 : i32
    %c0_i32 = arith.constant 0 : i32
    %c0_i32_0 = arith.constant 0 : i32
    return %c0_i32, %1 : i32, i32
  }
  func.func @transform_2(%arg0: i32, %arg1: i32) -> (i32, i32, i32) {
    %c0_i32 = arith.constant 0 : i32
    %c0_i32_0 = arith.constant 0 : i32
    %c0_i32_1 = arith.constant 0 : i32
    return %arg0, %c0_i32, %c0_i32_0 : i32, i32, i32
  }
}

</mosaic_0001>

<llo_original>
// kernel: rank_cross_entropy_loss_pallas.1
$region0: #{rank_cross_entropy_loss_pallas.1}
  #allocation0 [shape = 'u32[]', space=smem, size = 0x4, offset = 0x4, fixed_abs, tag = 'smem constant byte address 0x4 - core index']
  #allocation1 [shape = 'u32[144,128]{1,0:T(1,128)}', space=vmem, size = 0x12000, scoped, tag = 'internal scratch']
  #allocation2 [shape = 'f32[1,128]{1,0:T(1,128)}', space=vmem, size = 0x200, scoped, tag = 'scratch operand']
  %s0 = inlined_call_operand.vmem [shape: f32[8,256], index: 0, kind: input, shape index: {}]
  %s1 = inlined_call_operand.vmem [shape: f32[8,256], index: 1, kind: input, shape index: {}]
  %s2 = inlined_call_operand.vmem [shape: f32[2,8,128], index: 2, kind: output, shape index: {}]
  %s3 = sld [smem:[#allocation0]]
  $region49: #{rank_cross_entropy_loss_pallas.1} parent=0
    _
  %s5 = ssub.s32 1, %s3
  %s6 = scalar_select 0, %s5, %s3
  loop: start=0, step=1, limit=4
  $region2: #{rank_cross_entropy_loss_pallas.1} parent=0 // loop_pre_header
    _
  $region3: #{rank_cross_entropy_loss_pallas.1} parent=0 // loop_header
    %s8 = sphi 0, %s12
    %p9 = scmp.ge.s32.totalorder %s8, 4
    %s15 = sphi 0, %s27
    %s16 = sphi 0, %s23
    %s17 = sphi 0, %s15
    %s18 = sphi 0, %s16
    %s19 = sphi 0, %s17
    %s20 = sphi 0, %s18
    %s32 = sphi 0, %s34
    %s35 = sphi 0, %s32
    %s36 = sphi 0, %s35
    %s52 = sphi 0, %s36
    %s60 = sphi 0, %s62
    %s63 = sphi 0, %s60
    %s64 = sphi 0, %s63
    %s80 = sphi 0, %s64
    %s86 = sphi 0, %s88
    %s89 = sphi 0, %s86
    %s90 = sphi 0, %s89
    %s106 = sphi 0, %s90
  $region4: #{rank_cross_entropy_loss_pallas.1} parent=0 // loop_header_branch
    %11 = sbr.rel (%p9) target = $region8
  $region5: #{rank_cross_entropy_loss_pallas.1} parent=0 // loop_body
    %s13 = ssub.s32 %s8, 1
    %s14 = ssub.s32 %s8, 2
    %s21 = sadd.s32 1, %s16
    %p22 = scmp.ge.s32.totalorder %s21, 1
    %s23 = scalar_select %p22, 0, %s21
    %s24 = sadd.s32 1, %s15
    %s25 = scalar_select %p22, %s24, %s15
    %p26 = scmp.ge.s32.totalorder %s25, 2
    %s27 = scalar_select %p26, 0, %s25
    %s28 = sadd.s32 %s15, %s16
    %s29 = sadd.s32 %s27, %s23
    %s30 = ssub.s32 %s28, %s29
    %p31 = scmp.eq.s32.totalorder %s30, 0
    %s33 = sadd.s32 %s32, 1
    %s34 = scalar_select %p31, %s32, %s33
    %p37 = pneg %p31
    %p38 = scmp.eq.s32.totalorder %s8, 1
    %p39 = por %p37, %p38
    %p40 = scmp.ne.s32.totalorder %s32, %s35
    %p41 = scmp.eq.s32.totalorder %s8, 0
    %p42 = por %p40, %p41
    %p43 = scmp.ne.s32.totalorder %s32, %s35
    %p44 = scmp.eq.s32.totalorder %s13, 1
    %p45 = por %p43, %p44
    %p46 = scmp.ne.s32.totalorder %s35, %s36
    %p47 = scmp.eq.s32.totalorder %s13, 0
    %p48 = por %p46, %p47
    %p49 = scmp.ne.s32.totalorder %s35, %s36
    %p50 = scmp.eq.s32.totalorder %s14, 1
    %p51 = por %p49, %p50
    %p53 = scmp.ne.s32.totalorder %s36, %s52
    %p54 = scmp.eq.s32.totalorder %s14, 0
    %p55 = por %p53, %p54
    %s56 = sadd.s32 %s15, %s16
    %s57 = sadd.s32 %s27, %s23
    %s58 = ssub.s32 %s56, %s57
    %p59 = scmp.eq.s32.totalorder %s58, 0
    %s61 = sadd.s32 %s60, 1
    %s62 = scalar_select %p59, %s60, %s61
    %p65 = pneg %p59
    %p66 = scmp.eq.s32.totalorder %s8, 1
    %p67 = por %p65, %p66
    %p68 = scmp.ne.s32.totalorder %s60, %s63
    %p69 = scmp.eq.s32.totalorder %s8, 0
    %p70 = por %p68, %p69
    %p71 = scmp.ne.s32.totalorder %s60, %s63
    %p72 = scmp.eq.s32.totalorder %s13, 1
    %p73 = por %p71, %p72
    %p74 = scmp.ne.s32.totalorder %s63, %s64
    %p75 = scmp.eq.s32.totalorder %s13, 0
    %p76 = por %p74, %p75
    %p77 = scmp.ne.s32.totalorder %s63, %s64
    %p78 = scmp.eq.s32.totalorder %s14, 1
    %p79 = por %p77, %p78
    %p81 = scmp.ne.s32.totalorder %s64, %s80
    %p82 = scmp.eq.s32.totalorder %s14, 0
    %p83 = por %p81, %p82
    %s84 = ssub.s32 %s15, %s27
    %p85 = scmp.eq.s32.totalorder %s84, 0
    %s87 = sadd.s32 %s86, 1
    %s88 = scalar_select %p85, %s86, %s87
    %p91 = pneg %p85
    %p92 = scmp.eq.s32.totalorder %s8, 1
    %p93 = por %p91, %p92
    %p94 = scmp.ne.s32.totalorder %s86, %s89
    %p95 = scmp.eq.s32.totalorder %s8, 0
    %p96 = por %p94, %p95
    %p97 = scmp.ne.s32.totalorder %s86, %s89
    %p98 = scmp.eq.s32.totalorder %s13, 1
    %p99 = por %p97, %p98
    %p100 = scmp.ne.s32.totalorder %s89, %s90
    %p101 = scmp.eq.s32.totalorder %s13, 0
    %p102 = por %p100, %p101
    %p103 = scmp.ne.s32.totalorder %s89, %s90
    %p104 = scmp.eq.s32.totalorder %s14, 1
    %p105 = por %p103, %p104
    %p107 = scmp.ne.s32.totalorder %s90, %s106
    %p108 = scmp.eq.s32.totalorder %s14, 0
    %p109 = por %p107, %p108
    %p110 = scmp.le.s32.totalorder 1, %s8
    %p111 = scmp.lt.s32.totalorder %s8, 3
    %p112 = pnand %p110, %p111
    %p113 = pneg %p112
    // Predicated region
    $region9: #{rank_cross_entropy_loss_pallas.1} parent=5 // pred_check
      _
    $region10: #{rank_cross_entropy_loss_pallas.1} parent=5 // pred_check_branch
      %115 = sbr.rel (%p112) target = $region12
    $region11: #{rank_cross_entropy_loss_pallas.1} parent=5 // pred_region
      %s116 = ssub.s32 %s8, 1
    $region12: #{rank_cross_entropy_loss_pallas.1} parent=5 // pred_fallthru
      _
    %p117 = scmp.lt.s32.totalorder %s8, 2
    // Predicated region
    $region13: #{rank_cross_entropy_loss_pallas.1} parent=5 // pred_check
      %p118 = pneg %p117
    $region14: #{rank_cross_entropy_loss_pallas.1} parent=5 // pred_check_branch
      %120 = sbr.rel (%p118) target = $region16
    $region15: #{rank_cross_entropy_loss_pallas.1} parent=5 // pred_region
      // Predicated region
      $region17: #{rank_cross_entropy_loss_pallas.1} parent=15 // pred_check
        %p121 = pneg %p42
      $region18: #{rank_cross_entropy_loss_pallas.1} parent=15 // pred_check_branch
        %123 = sbr.rel (%p121) target = $region20
      $region19: #{rank_cross_entropy_loss_pallas.1} parent=15 // pred_region
        %s124 = sadd.s32 %s15, %s16
        %p125 = scmp.lt.s32.totalorder %s124, 1
        %s126 = scalar_select %p125, %s124, 1
        %s127 = smul.addr %s126, 8
        %s128 = scalar_lea.vmem %s0, %s127
        %s129 = sadd.s32 %s15, %s16
      $region20: #{rank_cross_entropy_loss_pallas.1} parent=15 // pred_fallthru
        _
      // Predicated region
      $region21: #{rank_cross_entropy_loss_pallas.1} parent=15 // pred_check
        %p130 = pneg %p70
      $region22: #{rank_cross_entropy_loss_pallas.1} parent=15 // pred_check_branch
        %132 = sbr.rel (%p130) target = $region24
      $region23: #{rank_cross_entropy_loss_pallas.1} parent=15 // pred_region
        %s133 = sadd.s32 %s15, %s16
        %p134 = scmp.lt.s32.totalorder %s133, 1
        %s135 = scalar_select %p134, %s133, 1
        %s136 = smul.addr %s135, 8
        %s137 = scalar_lea.vmem %s1, %s136
        %s138 = sadd.s32 %s15, %s16
      $region24: #{rank_cross_entropy_loss_pallas.1} parent=15 // pred_fallthru
        _
    $region16: #{rank_cross_entropy_loss_pallas.1} parent=5 // pred_fallthru
      _
    %p139 = scmp.le.s32.totalorder 1, %s8
    %p140 = scmp.lt.s32.totalorder %s8, 3
    %p141 = pnand %p139, %p140
    %p142 = pneg %p141
    // Predicated region
    $region25: #{rank_cross_entropy_loss_pallas.1} parent=5 // pred_check
      _
    $region26: #{rank_cross_entropy_loss_pallas.1} parent=5 // pred_check_branch
      %144 = sbr.rel (%p141) target = $region28
    $region27: #{rank_cross_entropy_loss_pallas.1} parent=5 // pred_region
      %s145 = ssub.s32 %s8, 1
      %s146 = sadd.s32 %s17, %s18
      %p147 = scmp.lt.s32.totalorder %s146, 1
      %s148 = scalar_select %p147, %s146, 1
      %s149 = smul.addr %s148, 8
      %s150 = scalar_lea.vmem %s0, %s149
      %p151 = pneg %p48
      %p152 = pneg %p45
      %s153 = sadd.s32 %s17, %s18
      %p154 = scmp.lt.s32.totalorder %s153, 1
      %s155 = scalar_select %p154, %s153, 1
      %s156 = smul.addr %s155, 8
      %s157 = scalar_lea.vmem %s1, %s156
      %p158 = pneg %p76
      %p159 = pneg %p73
      %p160 = pneg %p102
      %p161 = pneg %p99
      %p162 = scmp.lt.s32.totalorder %s17, 1
      %s163 = scalar_select %p162, %s17, 1
      %s164 = smul.addr %s163, 8
      %s165 = scalar_lea.vmem %s2, %s164
      %s166 = sadd.s32 %s17, %s18
      %p167 = scmp.lt.s32.totalorder %s166, 1
      %s168 = scalar_select %p167, %s166, 1
      %s169 = smul.addr %s168, 8
      %s170 = scalar_lea.vmem %s0, %s169
      %s171 = sadd.s32 %s17, %s18
      %s172 = sadd.s32 %s17, %s18
      %p173 = scmp.lt.s32.totalorder %s172, 1
      %s174 = scalar_select %p173, %s172, 1
      %s175 = smul.addr %s174, 8
      %s176 = scalar_lea.vmem %s1, %s175
      %s177 = sadd.s32 %s17, %s18
      %p178 = scmp.lt.s32.totalorder %s17, 1
      %s179 = scalar_select %p178, %s17, 1
      %s180 = smul.addr %s179, 8
      %s181 = scalar_lea.vmem %s2, %s180
      %p182 = scmp.eq.s32.totalorder %s18, 0
      // Predicated region
      $region29: #{rank_cross_entropy_loss_pallas.1} parent=27 // pred_check
        %p183 = pneg %p182
      $region30: #{rank_cross_entropy_loss_pallas.1} parent=27 // pred_check_branch
        %185 = sbr.rel (%p183) target = $region32
      $region31: #{rank_cross_entropy_loss_pallas.1} parent=27 // pred_region
        %186 = vst [vmem:[#allocation2] sm:$0x1] 0.0
      $region32: #{rank_cross_entropy_loss_pallas.1} parent=27 // pred_fallthru
        _
      %v187 = vld [vmem:[%s170] sm:$0xff]
      %v188 = vld [vmem:[%s176] sm:$0xff]
      %v189 = vrot.slane %v187, 4
      %v190 = vmax.f32 %v187, %v189
      %v191 = vrot.slane %v190, 2
      %v192 = vmax.f32 %v190, %v191
      %v193 = vrot.slane %v192, 1
      %v194 = vmax.f32 %v192, %v193
      %v195 = vsub.f32 %v187, %v194
      %v196 = vmul.f32 %v195, 1.442695
      %v197 = vpow.pop %v196
      %v198 = vrot.slane %v197, 4
      %v199 = vadd.f32 %v197, %v198
      %v200 = vrot.slane %v199, 2
      %v201 = vadd.f32 %v199, %v200
      %v202 = vrot.slane %v201, 1
      %v203 = vadd.f32 %v201, %v202
      %v204 = vmul.f32 %v203, 2.220446e-16
      %v205 = vadd.f32 %v197, %v204
      %v206 = vlog2.pop %v205
      %v207 = vmul.f32 %v206, 0.6931472
      %v208 = vlog2.pop %v203
      %v209 = vmul.f32 %v208, 0.6931472
      %v210 = vsub.f32 %v207, %v209
      %v211 = vmul.f32 %v188, %v210
      %v212 = vld [vmem:[#allocation2] sm:$0x1]
      %v213 = vrot.slane %v211, 4
      %v214 = vadd.f32 %v211, %v213
      %v215 = vrot.slane %v214, 2
      %v216 = vadd.f32 %v214, %v215
      %v217 = vrot.slane %v216, 1
      %v218 = vadd.f32 %v216, %v217
      %v219 = vadd.f32 %v212, %v218
      %220 = vst [vmem:[#allocation2] sm:$0x1] %v219
      // Predicated region
      $region33: #{rank_cross_entropy_loss_pallas.1} parent=27 // pred_check
        %p221 = pneg %p182
      $region34: #{rank_cross_entropy_loss_pallas.1} parent=27 // pred_check_branch
        %223 = sbr.rel (%p221) target = $region36
      $region35: #{rank_cross_entropy_loss_pallas.1} parent=27 // pred_region
        %v224 = vld [vmem:[#allocation2] sm:$0x1]
        %vm225 = vcmask 1040384
        %v226 = vsel %vm225, %v224, 0.0
        %227 = vadd.xlane.f32.xlu0 %v226
        %v228 = vpop.xlane.xlu0 %227
        %v229 = vrot.slane %v228, 4
        %v230 = vadd.f32 %v228, %v229
        %v231 = vrot.slane %v230, 2
        %v232 = vadd.f32 %v230, %v231
        %v233 = vrot.slane %v232, 1
        %v234 = vadd.f32 %v232, %v233
        %s235 = vtos %v234
        %v236 = vstv %s235
        %237 = vst [vmem:[%s181] sm:$0xff] %v236
      $region36: #{rank_cross_entropy_loss_pallas.1} parent=27 // pred_fallthru
        _
      %p238 = scmp.lt.s32.totalorder %s17, 1
      %s239 = scalar_select %p238, %s17, 1
      %s240 = smul.addr %s239, 8
      %s241 = scalar_lea.vmem %s2, %s240
      // Predicated region
      $region37: #{rank_cross_entropy_loss_pallas.1} parent=27 // pred_check
        %p242 = pneg %p99
      $region38: #{rank_cross_entropy_loss_pallas.1} parent=27 // pred_check_branch
        %244 = sbr.rel (%p242) target = $region40
      $region39: #{rank_cross_entropy_loss_pallas.1} parent=27 // pred_region
        _
      $region40: #{rank_cross_entropy_loss_pallas.1} parent=27 // pred_fallthru
        _
    $region28: #{rank_cross_entropy_loss_pallas.1} parent=5 // pred_fallthru
      _
    %p245 = scmp.le.s32.totalorder 2, %s8
    // Predicated region
    $region41: #{rank_cross_entropy_loss_pallas.1} parent=5 // pred_check
      %p246 = pneg %p245
    $region42: #{rank_cross_entropy_loss_pallas.1} parent=5 // pred_check_branch
      %248 = sbr.rel (%p246) target = $region44
    $region43: #{rank_cross_entropy_loss_pallas.1} parent=5 // pred_region
      %s249 = ssub.s32 %s8, 2
      // Predicated region
      $region45: #{rank_cross_entropy_loss_pallas.1} parent=43 // pred_check
        %p250 = pneg %p105
      $region46: #{rank_cross_entropy_loss_pallas.1} parent=43 // pred_check_branch
        %252 = sbr.rel (%p250) target = $region48
      $region47: #{rank_cross_entropy_loss_pallas.1} parent=43 // pred_region
        %p253 = scmp.lt.s32.totalorder %s19, 1
        %s254 = scalar_select %p253, %s19, 1
        %s255 = smul.addr %s254, 8
        %s256 = scalar_lea.vmem %s2, %s255
      $region48: #{rank_cross_entropy_loss_pallas.1} parent=43 // pred_fallthru
        _
    $region44: #{rank_cross_entropy_loss_pallas.1} parent=5 // pred_fallthru
      _
  $region6: #{rank_cross_entropy_loss_pallas.1} parent=0 // loop_footer
    %s12 = sadd.s32 1, %s8
  $region7: #{rank_cross_entropy_loss_pallas.1} parent=0 // loop_footer_branch
    %7 = sbr.rel target = $region3
  $region8: #{rank_cross_entropy_loss_pallas.1} parent=0 // loop_exit
    _

</llo_original>
